<compile_context>
chip_gen: v5e
topology: v5e:2x2
jax: 0.10.0
libtpu: 0.0.40
codegen_flags: <defaults>
</compile_context>

<pallas_src>
import jax
import jax.numpy as jnp
from jax.experimental import pallas as pl
from jax.experimental.pallas import tpu as pltpu


# ----------------------------------------------------------------------------
# Pallas kernels
# ----------------------------------------------------------------------------
def _linear_kernel(x_ref, wt_ref, b_ref, y_ref, acc_ref):
    """y = x @ W^T + b, tiled over (batch, Fout, Fin) with f32 accumulator."""
    k = pl.program_id(2)

    @pl.when(k == 0)
    def _():
        acc_ref[...] = jnp.zeros_like(acc_ref)

    acc_ref[...] += jnp.dot(x_ref[...], wt_ref[...],
                            preferred_element_type=jnp.float32)

    @pl.when(k == pl.num_programs(2) - 1)
    def _():
        y_ref[...] = (acc_ref[...] + b_ref[...].astype(jnp.float32)
                      ).astype(y_ref.dtype)


def _regularize_kernel(wd_ref, p_ref, o_ref):
    """grad = weight_decay * param (elementwise over a lane-dense slab)."""
    o_ref[...] = (wd_ref[0] * p_ref[...].astype(jnp.float32)).astype(o_ref.dtype)


# ----------------------------------------------------------------------------
# Plain-JAX wrappers (pallas_call plumbing only)
# ----------------------------------------------------------------------------
def linear_forward(x, w_t, bias2d, *, tb=512, tn=512, tk=512):
    """x: [B, Fin], w_t: [Fin, Fout] (pre-transposed once), bias2d: [1, Fout].

    Default 512 tiles keep f32 VMEM use ~7 MiB (2x double-buffered 1 MiB inputs
    + 2x 1 MiB output + 1 MiB accumulator) -- safe under v7x's 32 MiB default
    scoped VMEM; raise vmem_limit_bytes before raising tiles further.
    """
    B, Fin = x.shape
    Fout = w_t.shape[1]
    TB = min(tb, B)
    TN = min(tn, Fout)
    TK = min(tk, Fin)
    grid = (pl.cdiv(B, TB), pl.cdiv(Fout, TN), pl.cdiv(Fin, TK))

    return pl.pallas_call(
        _linear_kernel,
        grid=grid,
        in_specs=[
            pl.BlockSpec((TB, TK), lambda i, j, k: (i, k)),   # x
            pl.BlockSpec((TK, TN), lambda i, j, k: (k, j)),   # W^T (static, pre-transposed)
            pl.BlockSpec((1, TN), lambda i, j, k: (0, j)),    # bias
        ],
        out_specs=pl.BlockSpec((TB, TN), lambda i, j, k: (i, j)),
        out_shape=jax.ShapeDtypeStruct((B, Fout), x.dtype),
        scratch_shapes=[pltpu.VMEM((TB, TN), jnp.float32)],
        compiler_params=pltpu.CompilerParams(
            dimension_semantics=("parallel", "parallel", "arbitrary")),
    )(x, w_t, bias2d)


def l2_regularize_flat(flat, weight_decay, *, tile_rows=512):
    """weight_decay * flat for a 1-D parameter view.

    The vector is padded into a lane-dense [rows, lane_w] slab (lane_w a
    multiple of 128, up to 2048 wide -> unmasked wide vst / efficient DMA) and
    processed in 512-row grid tiles so only ~2 tiles (in+out, double-buffered)
    are VMEM-resident at a time -- scales to arbitrarily large parameters.
    """
    n = flat.shape[0]
    lane_w = min(2048, pl.cdiv(n, 128) * 128)
    rows = pl.cdiv(n, lane_w)
    padded = rows * lane_w
    if padded != n:
        flat = jnp.pad(flat, (0, padded - n))
    slab = flat.reshape(rows, lane_w)

    tr = min(tile_rows, rows)           # tile_rows=512 is a multiple of 8
    grid = (pl.cdiv(rows, tr),)
    wd = jnp.asarray([weight_decay], dtype=jnp.float32)

    out = pl.pallas_call(
        _regularize_kernel,
        grid=grid,
        in_specs=[
            pl.BlockSpec(memory_space=pltpu.MemorySpace.SMEM),    # weight_decay
            pl.BlockSpec((tr, lane_w), lambda i: (i, 0)),         # param slab
        ],
        out_specs=pl.BlockSpec((tr, lane_w), lambda i: (i, 0)),
        out_shape=jax.ShapeDtypeStruct((rows, lane_w), flat.dtype),
        compiler_params=pltpu.CompilerParams(
            dimension_semantics=("parallel",)),
    )(wd, slab)
    return out.reshape(-1)[:n]


# ----------------------------------------------------------------------------
# Module
# ----------------------------------------------------------------------------
class WeightDecay:
    """JAX mirror of the PyTorch WeightDecay wrapper around nn.Linear.

    forward(x) returns the wrapped linear's output (identical semantics).  The
    L2 gradients the PyTorch backward hook would install are produced by a
    dedicated grid-tiled Pallas kernel (decoupled from the batch-parallel
    matmul) and cached in `self.param_grads`.
    """

    def __init__(self, params, weight_decay, name=None):
        if weight_decay < 0.0:
            raise ValueError(
                "Regularization's weight_decay should be greater than 0.0, "
                "got {}".format(weight_decay))
        self.params = params                 # {'weight': [out,in], 'bias': [out]}
        self.weight_decay = weight_decay
        self.name = name
        self.param_grads = None

        weight = params["weight"]
        bias = params["bias"]
        fout, _ = weight.shape
        # One-time layout plumbing (parameters are static across calls):
        #   * W^T materialized once -> canonical [M,K]@[K,N] MXU contraction,
        #     no per-grid-step re-layout inside the kernel.
        #   * all params concatenated into one flat vector so the per-forward
        #     regularization is a single lane-dense kernel launch.
        self._w_t = jnp.asarray(weight.T)               # [Fin, Fout]
        self._bias2d = bias.reshape(1, fout)
        self._flat_params = jnp.concatenate(
            [weight.reshape(-1), bias.reshape(-1)])
        self._n_weight = weight.size
        self._shapes = {"weight": weight.shape, "bias": bias.shape}

    def forward(self, x):
        y = linear_forward(x, self._w_t, self._bias2d)

        # Mirrors what the PyTorch full-backward hook installs as param.grad.
        if self.name is None:
            g = l2_regularize_flat(self._flat_params, self.weight_decay)
            nw = self._n_weight
            self.param_grads = {
                "weight": g[:nw].reshape(self._shapes["weight"]),
                "bias": g[nw:].reshape(self._shapes["bias"]),
            }
        else:
            self.param_grads = {
                pname: self.regularize(p)
                for pname, p in self.params.items() if self.name in pname
            }
        return y

    def regularize(self, parameter):
        # TODO(synk): regularize() is abstract upstream; L2 variant chosen.
        return l2_regularize_flat(
            parameter.reshape(-1), self.weight_decay).reshape(parameter.shape)

    def remove(self):
        # TODO(synk): autograd hook removal has no Pallas analogue; clear cache.
        self.param_grads = None

    def extra_repr(self):
        rep = "weight_decay={}".format(self.weight_decay)
        if self.name is not None:
            rep += ", name={}".format(self.name)
        return rep

    def __call__(self, *args, **kwargs):
        return self.forward(*args, **kwargs)


# ----------------------------------------------------------------------------
# Main
# ----------------------------------------------------------------------------
if __name__ == "__main__":
    key = jax.random.PRNGKey(0)
    k_x, k_w, k_b = jax.random.split(key, 3)

    batch, hidden = 8, 32

    x = jax.random.normal(k_x, (batch, hidden), dtype=jnp.float32)
    # Deterministic "nn.Linear(32, 32)" parameters (PyTorch layout [out, in]).
    weight = jax.random.normal(k_w, (hidden, hidden), dtype=jnp.float32) * 0.1
    bias = jax.random.normal(k_b, (hidden,), dtype=jnp.float32) * 0.1

    wd_module = WeightDecay({"weight": weight, "bias": bias}, weight_decay=1e-2)

    # Hot path: one matmul kernel + one regularize kernel per forward.
    y = jax.block_until_ready(wd_module(x))
    g_w = jax.block_until_ready(wd_module.param_grads["weight"])
    g_b = jax.block_until_ready(wd_module.param_grads["bias"])

    # Standalone regularize (abstract method concretized as L2), exercised once.
    g_b_standalone = jax.block_until_ready(wd_module.regularize(bias))

    # Cross-check against plain JAX reference.
    y_ref = x @ weight.T + bias
    assert jnp.allclose(y, y_ref, atol=1e-5, rtol=1e-5)
    assert jnp.allclose(g_w, 1e-2 * weight, atol=1e-7)
    assert jnp.allclose(g_b, 1e-2 * bias, atol=1e-7)
    assert jnp.allclose(g_b_standalone, 1e-2 * bias, atol=1e-7)
    assert y.shape == (batch, hidden) and y.dtype == x.dtype

    print("KERNEL_OK")
</pallas_src>

<mosaic_0001>
module attributes {stable_mosaic.version = 11 : i64} {
  func.func @_linear_kernel(%arg0: i32, %arg1: i32, %arg2: i32, %arg3: memref<8x32xf32, #tpu.memory_space<vmem>>, %arg4: memref<32x32xf32, #tpu.memory_space<vmem>>, %arg5: memref<1x32xf32, #tpu.memory_space<vmem>>, %arg6: memref<8x32xf32, #tpu.memory_space<vmem>>, %arg7: memref<8x32xf32, #tpu.memory_space<vmem>>) attributes {dimension_semantics = [#tpu.dimension_semantics<parallel>, #tpu.dimension_semantics<parallel>, #tpu.dimension_semantics<arbitrary>], iteration_bounds = array<i64: 1, 1, 1>, scalar_prefetch = 0 : i64, scratch_operands = 1 : i64, tpu.core_type = #tpu.core_type<tc>, window_params = [{transform_indices = @transform_0, window_bounds = array<i64: 8, 32>}, {transform_indices = @transform_1, window_bounds = array<i64: 32, 32>}, {transform_indices = @transform_2, window_bounds = array<i64: 1, 32>}, {transform_indices = @transform_3, window_bounds = array<i64: 8, 32>}]} {
    %c0_i32 = arith.constant 0 : i32
    %0 = arith.cmpi eq, %arg2, %c0_i32 : i32
    %1 = arith.extui %0 : i1 to i32
    %c0_i32_0 = arith.constant 0 : i32
    %2 = arith.cmpi ne, %1, %c0_i32_0 : i32
    scf.if %2 {
      %cst_10 = arith.constant 0.000000e+00 : f32
      %12 = vector.broadcast %cst_10 : f32 to vector<8x32xf32>
      %c0_11 = arith.constant 0 : index
      %c0_12 = arith.constant 0 : index
      %13 = vector.load %arg7[%c0_11, %c0_12] : memref<8x32xf32, #tpu.memory_space<vmem>>, vector<8x32xf32>
      tpu.vector_store %arg7[%c0_11, %c0_12], %12 {strides = array<i32>} : memref<8x32xf32, #tpu.memory_space<vmem>>, vector<8x32xf32>,
    } else {
    }
    %c0 = arith.constant 0 : index
    %c0_1 = arith.constant 0 : index
    %3 = vector.load %arg7[%c0, %c0_1] : memref<8x32xf32, #tpu.memory_space<vmem>>, vector<8x32xf32>
    %c0_2 = arith.constant 0 : index
    %c0_3 = arith.constant 0 : index
    %4 = vector.load %arg3[%c0_2, %c0_3] : memref<8x32xf32, #tpu.memory_space<vmem>>, vector<8x32xf32>
    %c0_4 = arith.constant 0 : index
    %c0_5 = arith.constant 0 : index
    %5 = vector.load %arg4[%c0_4, %c0_5] : memref<32x32xf32, #tpu.memory_space<vmem>>, vector<32x32xf32>
    %cst = arith.constant dense<0.000000e+00> : vector<8x32xf32>
    %6 = tpu.matmul %4, %5, %cst {dimension_numbers = #tpu.dot_dimension_numbers<[1], [0], [0], [1], [0, 0, 1, 1], [], []>} : vector<8x32xf32>, vector<32x32xf32>, vector<8x32xf32> -> vector<8x32xf32>
    %7 = arith.addf %3, %6 : vector<8x32xf32>
    %c0_6 = arith.constant 0 : index
    %c0_7 = arith.constant 0 : index
    %8 = vector.load %arg7[%c0_6, %c0_7] : memref<8x32xf32, #tpu.memory_space<vmem>>, vector<8x32xf32>
    tpu.vector_store %arg7[%c0_6, %c0_7], %7 {strides = array<i32>} : memref<8x32xf32, #tpu.memory_space<vmem>>, vector<8x32xf32>,
    %c0_i32_8 = arith.constant 0 : i32
    %9 = arith.cmpi eq, %arg2, %c0_i32_8 : i32
    %10 = arith.extui %9 : i1 to i32
    %c0_i32_9 = arith.constant 0 : i32
    %11 = arith.cmpi ne, %10, %c0_i32_9 : i32
    scf.if %11 {
      %c0_10 = arith.constant 0 : index
      %c0_11 = arith.constant 0 : index
      %12 = vector.load %arg7[%c0_10, %c0_11] : memref<8x32xf32, #tpu.memory_space<vmem>>, vector<8x32xf32>
      %c0_12 = arith.constant 0 : index
      %c0_13 = arith.constant 0 : index
      %13 = vector.load %arg5[%c0_12, %c0_13] : memref<1x32xf32, #tpu.memory_space<vmem>>, vector<1x32xf32>
      %14 = vector.broadcast %13 : vector<1x32xf32> to vector<8x32xf32>
      %15 = arith.addf %12, %14 : vector<8x32xf32>
      %c0_14 = arith.constant 0 : index
      %c0_15 = arith.constant 0 : index
      %16 = vector.load %arg6[%c0_14, %c0_15] : memref<8x32xf32, #tpu.memory_space<vmem>>, vector<8x32xf32>
      tpu.vector_store %arg6[%c0_14, %c0_15], %15 {strides = array<i32>} : memref<8x32xf32, #tpu.memory_space<vmem>>, vector<8x32xf32>,
    } else {
    }
    return
  }
  func.func @transform_0(%arg0: i32, %arg1: i32, %arg2: i32) -> (i32, i32) {
    %c0_i32 = arith.constant 0 : i32
    return %arg0, %arg2 : i32, i32
  }
  func.func @transform_1(%arg0: i32, %arg1: i32, %arg2: i32) -> (i32, i32) {
    %c0_i32 = arith.constant 0 : i32
    return %arg2, %arg1 : i32, i32
  }
  func.func @transform_2(%arg0: i32, %arg1: i32, %arg2: i32) -> (i32, i32) {
    %c0_i32 = arith.constant 0 : i32
    %c0_i32_0 = arith.constant 0 : i32
    return %c0_i32, %arg1 : i32, i32
  }
  func.func @transform_3(%arg0: i32, %arg1: i32, %arg2: i32) -> (i32, i32) {
    %c0_i32 = arith.constant 0 : i32
    return %arg0, %arg1 : i32, i32
  }
}

</mosaic_0001>

<llo_original>
// kernel: tpu_custom_call.1
$region0: #{tpu_custom_call.1}
  #allocation0 [shape = 'u32[]', space=smem, size = 0x4, offset = 0x4, fixed_abs, tag = 'smem constant byte address 0x4 - core index']
  #allocation1 [shape = 'u32[72,128]{1,0:T(1,128)}', space=vmem, size = 0x9000, scoped, tag = 'internal scratch']
  #allocation2 [shape = 'f32[8,32]{1,0:T(8,128)}', space=vmem, size = 0x1000, scoped, tag = 'scratch operand']
  %s0 = inlined_call_operand.hbm [shape: f32[8,32], index: 0, kind: input, shape index: {}]
  %s1 = inlined_call_operand.hbm [shape: f32[32,32], index: 1, kind: input, shape index: {}]
  %s2 = inlined_call_operand.vmem [shape: f32[1,32], index: 2, kind: input, shape index: {}]
  %s3 = inlined_call_operand.hbm [shape: f32[8,32], index: 3, kind: output, shape index: {}]
  %s4 = sld [smem:[#allocation0]]
  $region38: #{tpu_custom_call.1} parent=0
    _
  %s6 = ssub.s32 1, %s4
  %s7 = scalar_select 0, %s6, %s4
  $region1: #{tpu_custom_call.1} parent=0
    #allocation3 [shape = 'u8[4096]{0}', space=vmem, size = 0x1000, scoped, tag = 'input window, operand 0, single buffered']
    #allocation4 [shape = 's32[1]{0}', space=sflag, size = 0x4, scoped, tag = 'scoped memory for tpu_custom_call.1']
    #allocation5 [shape = 's32[1]{0}', space=sflag, size = 0x4, scoped, tag = 'scoped memory for tpu_custom_call.1']
    #allocation6 [shape = 'u8[16384]{0}', space=vmem, size = 0x4000, scoped, tag = 'input window, operand 1, single buffered']
    #allocation7 [shape = 's32[1]{0}', space=sflag, size = 0x4, scoped, tag = 'scoped memory for tpu_custom_call.1']
    #allocation8 [shape = 'u8[4096]{0}', space=vmem, size = 0x1000, scoped, tag = 'output window, operand 0, single buffered']
    %8 = vsyncpa [#allocation4], 0
    %9 = vsyncpa [#allocation7], 0
    %10 = vsyncpa [#allocation5], 0
    // Predicated region
    $region2: #{tpu_custom_call.1} parent=1 // pred_check
      _
    $region3: #{tpu_custom_call.1} parent=1 // pred_check_branch
      %12 = sbr.rel (0) target = $region5
    $region4: #{tpu_custom_call.1} parent=1 // pred_region
      %14 = vsyncadd [#allocation4], 0
      %s16 = sshll.u32 %s0, 4
      %s17 = int_to_ptr.hbm [resolvable:$true] %s16
      %s18 = sshll.u32 [#allocation3], 4
      %s19 = int_to_ptr.vmem [resolvable:$true] %s18
      %21 = dma.hbm_to_vmem [thread:$0]  %s17, 128, %s19, [#allocation4]
    $region5: #{tpu_custom_call.1} parent=1 // pred_fallthru
      _
    // Predicated region
    $region6: #{tpu_custom_call.1} parent=1 // pred_check
      _
    $region7: #{tpu_custom_call.1} parent=1 // pred_check_branch
      %23 = sbr.rel (0) target = $region9
    $region8: #{tpu_custom_call.1} parent=1 // pred_region
      %25 = vsyncadd [#allocation7], 0
      %s26 = sshll.u32 %s1, 4
      %s27 = int_to_ptr.hbm [resolvable:$true] %s26
      %s28 = sshll.u32 [#allocation6], 4
      %s29 = int_to_ptr.vmem [resolvable:$true] %s28
      %34 = dma.hbm_to_vmem [thread:$0]  %s27, 512, %s29, [#allocation7], 128, 128, 8
    $region9: #{tpu_custom_call.1} parent=1 // pred_fallthru
      _
    // Predicated region
    $region10: #{tpu_custom_call.1} parent=1 // pred_check
      _
    $region11: #{tpu_custom_call.1} parent=1 // pred_check_branch
      %36 = sbr.rel (0) target = $region13
    $region12: #{tpu_custom_call.1} parent=1 // pred_region
      _
    $region13: #{tpu_custom_call.1} parent=1 // pred_fallthru
      _
    // Predicated region
    $region14: #{tpu_custom_call.1} parent=1 // pred_check
      _
    $region15: #{tpu_custom_call.1} parent=1 // pred_check_branch
      %38 = sbr.rel (0) target = $region17
    $region16: #{tpu_custom_call.1} parent=1 // pred_region
      %40 = dma.done [#allocation4], 128
    $region17: #{tpu_custom_call.1} parent=1 // pred_fallthru
      _
    // Predicated region
    $region18: #{tpu_custom_call.1} parent=1 // pred_check
      _
    $region19: #{tpu_custom_call.1} parent=1 // pred_check_branch
      %42 = sbr.rel (0) target = $region21
    $region20: #{tpu_custom_call.1} parent=1 // pred_region
      %44 = dma.done [#allocation7], 512
    $region21: #{tpu_custom_call.1} parent=1 // pred_fallthru
      _
    %p45 = scmp.eq.s32.totalorder 0, 0
    // Predicated region
    $region22: #{tpu_custom_call.1} parent=1 // pred_check
      %p46 = pneg %p45
    $region23: #{tpu_custom_call.1} parent=1 // pred_check_branch
      %48 = sbr.rel (%p46) target = $region25
    $region24: #{tpu_custom_call.1} parent=1 // pred_region
      %vm49 = vcmask 261120
      %50 = vst.msk [vmem:[#allocation2] sm:$0xff] %vm49, 0.0
    $region25: #{tpu_custom_call.1} parent=1 // pred_fallthru
      _
    %v51 = vld [vmem:[#allocation2] sm:$0xff]
    %v52 = vld [vmem:[#allocation3] sm:$0xff]
    %v53 = vld [vmem:[#allocation6] sm:$0xff]
    %v54 = vld [vmem:[#allocation6 + $0x8] sm:$0xff]
    %v55 = vld [vmem:[#allocation6 + $0x10] sm:$0xff]
    %v56 = vld [vmem:[#allocation6 + $0x18] sm:$0xff]
    %vm57 = vcmask 261120
    %v59 = vsel %vm57, %v52, 0
    %61 = vmatpush.msra.mxu0 0.0
    %62 = vmatpush.msra.mxu0 0.0
    %63 = vmatpush.msra.mxu0 0.0
    %64 = vmatpush.msra.mxu0 0.0
    %65 = vmatpush.msra.mxu0 0.0
    %66 = vmatpush.msra.mxu0 0.0
    %67 = vmatpush.msra.mxu0 0.0
    %68 = vmatpush.msra.mxu0 0.0
    %69 = vmatpush.msra.mxu0 0.0
    %70 = vmatpush.msra.mxu0 0.0
    %71 = vmatpush.msra.mxu0 0.0
    %72 = vmatpush.msra.mxu0 0.0
    %73 = vmatpush.msra.mxu0 %v56
    %74 = vmatpush.msra.mxu0 %v55
    %75 = vmatpush.msra.mxu0 %v54
    %76 = vmatpush.msra.mxu0 %v53
    %77 = vmatmul.f32.gmra.mxu0 %v59
    %v78 = vpop.f32.mrf.mxu0
    %v79 = vadd.f32 0.0, %v78
    %80 = vdwg.mxu0
    %v81 = vadd.f32 %v51, %v79
    %82 = vst.msk [vmem:[#allocation2] sm:$0xff] %vm57, %v81
    // Predicated region
    $region26: #{tpu_custom_call.1} parent=1 // pred_check
      %p83 = pneg %p45
    $region27: #{tpu_custom_call.1} parent=1 // pred_check_branch
      %85 = sbr.rel (%p83) target = $region29
    $region28: #{tpu_custom_call.1} parent=1 // pred_region
      %v86 = vld [vmem:[#allocation2] sm:$0xff]
      %v87 = vld [vmem:[%s2] sm:$0x1]
      %v89 = vperm.slane %v87, 0
      %v91 = vadd.f32 %v86, %v89
      %92 = vst.msk [vmem:[#allocation8] sm:$0xff] %vm57, %v91
    $region29: #{tpu_custom_call.1} parent=1 // pred_fallthru
      _
    // Predicated region
    $region30: #{tpu_custom_call.1} parent=1 // pred_check
      _
    $region31: #{tpu_custom_call.1} parent=1 // pred_check_branch
      %94 = sbr.rel (0) target = $region33
    $region32: #{tpu_custom_call.1} parent=1 // pred_region
      %96 = vsyncadd [#allocation5], 0
      %s98 = sshll.u32 [#allocation8], 4
      %s99 = int_to_ptr.vmem [resolvable:$true] %s98
      %s100 = sshll.u32 %s3, 4
      %s101 = int_to_ptr.hbm [resolvable:$true] %s100
      %103 = dma.vmem_to_hbm [thread:$0]  %s99, 128, %s101, [#allocation5]
    $region33: #{tpu_custom_call.1} parent=1 // pred_fallthru
      _
    // Predicated region
    $region34: #{tpu_custom_call.1} parent=1 // pred_check
      _
    $region35: #{tpu_custom_call.1} parent=1 // pred_check_branch
      %105 = sbr.rel (0) target = $region37
    $region36: #{tpu_custom_call.1} parent=1 // pred_region
      %107 = dma.done [#allocation5], 128
    $region37: #{tpu_custom_call.1} parent=1 // pred_fallthru
      _
    %108 = vsyncpa [#allocation4], 1
    %109 = vsyncpa [#allocation7], 1
    %110 = vsyncpa [#allocation5], 1

</llo_original>
